<compile_context>
chip_gen: v6e
topology: v6e:2x2x1
jax: 0.10.0
libtpu: 0.0.40
codegen_flags: <defaults>
</compile_context>

<pallas_src>
import functools
import math

import jax
import jax.numpy as jnp
from jax.experimental import pallas as pl
from jax.experimental.pallas import tpu as pltpu


def _round_up(n, m):
    return (n + m - 1) // m * m


def _resident_spec(shape):
    """Constant-index block: VMEM-resident across the grid, single-buffered."""
    idx = lambda i: (0,) * len(shape)
    try:
        return pl.BlockSpec(shape, idx, pipeline_mode=pl.Buffered(1))
    except Exception:  # pipeline_mode / Buffered unavailable -> default buffers
        return pl.BlockSpec(shape, idx)


def _vmem_budget_bytes(vmem_limit_bytes=None):
    if vmem_limit_bytes is not None:
        return int(vmem_limit_bytes)
    try:
        cap = pltpu.get_tpu_info().vmem_capacity_bytes
    except Exception:
        cap = 128 * 1024 * 1024
    # Leave headroom for compiler-internal scratch (critical on v7x: 64 MiB/TC).
    return int(cap) * 3 // 4


# ---------------------------------------------------------------------------
# Pass 1: hidden Linear + ReLU; bf16 h_act tiles; batch stats -> BN scale/shift.
# ---------------------------------------------------------------------------
def _hidden_stats_kernel(x_ref, w1_ref, b1_ref, gb_ref,
                         h_act_ref, ss_ref, sum_sc, sumsq_sc,
                         *, b_real, n_pad, eps):
    i = pl.program_id(0)

    @pl.when(i == 0)
    def _init():
        sum_sc[...] = jnp.zeros_like(sum_sc)
        sumsq_sc[...] = jnp.zeros_like(sumsq_sc)

    # MXU matmul: bf16 inputs (VPU cast co-issues under the MXU), f32 accum.
    h_act = jnp.maximum(
        jnp.dot(x_ref[...].astype(jnp.bfloat16), w1_ref[...],
                preferred_element_type=jnp.float32) + b1_ref[...], 0.0)

    # Stats from the f32 values; the HBM tile is stored in bf16.
    h_act_ref[...] = h_act.astype(h_act_ref.dtype)
    sum_sc[...] += jnp.sum(h_act, axis=0, keepdims=True)
    sumsq_sc[...] += jnp.sum(h_act * h_act, axis=0, keepdims=True)

    @pl.when(i == pl.num_programs(0) - 1)
    def _finalize():
        s = sum_sc[...]
        sq = sumsq_sc[...]
        if n_pad:  # batch-padding rows (x == 0) each contribute exactly relu(b1)
            pad = jnp.maximum(b1_ref[...], 0.0)
            s = s - n_pad * pad
            sq = sq - n_pad * (pad * pad)
        inv_b = 1.0 / b_real
        mean = s * inv_b
        var = jnp.maximum(sq * inv_b - mean * mean, 0.0)
        scale = gb_ref[0:1, :] * jax.lax.rsqrt(var + eps)   # gamma * rsqrt(var)
        shift = gb_ref[1:2, :] - mean * scale                # beta - mean*scale
        ss_ref[0:1, :] = scale
        ss_ref[1:2, :] = shift


# ---------------------------------------------------------------------------
# Pass 2: BatchNorm as one FMA + clustering Linear + softmax.
# ---------------------------------------------------------------------------
def _cluster_kernel(ss_ref, h_act_ref, w2_ref, b2_ref, h_ref, y_ref):
    scale = ss_ref[0:1, :]
    shift = ss_ref[1:2, :]
    h = h_act_ref[...].astype(jnp.float32) * scale + shift    # (tb, Hp) f32
    h_ref[...] = h

    logits = jnp.dot(h.astype(jnp.bfloat16), w2_ref[...],
                     preferred_element_type=jnp.float32) + b2_ref[...]
    m = jnp.max(logits, axis=1, keepdims=True)
    e = jnp.exp(logits - m)
    denom = jnp.sum(e, axis=1, keepdims=True)
    r = pl.reciprocal(denom, approx=True)
    r = r * (2.0 - denom * r)        # one Newton step -> near-exact row sums
    y_ref[...] = e * r


def ddc_forward(x, w1, b1, gamma, beta, w2, b2, *, batch_tile=512,
                vmem_limit_bytes=None, eps=1e-5):
    """DDCModule forward.

    x: (B, F) f32.  W1: (F, H), W2: (H, C)  (pre-transposed Linear weights).
    Returns (y: (B, C) softmax cluster assignments, h: (B, H) hidden codes).
    """
    B, F = x.shape
    H = w1.shape[1]
    C = w2.shape[1]
    Fp, Hp, Cp = _round_up(F, 128), _round_up(H, 128), _round_up(C, 128)
    vmem_limit = _vmem_budget_bytes(vmem_limit_bytes)

    # Batch tile: multiple of 16 (bf16 packs two rows per sublane), shrunk to
    # fit an explicit per-buffer budget (double-buffered streaming tiles +
    # single-buffered resident weights + scratch).
    x_bytes = 4 if Fp == F else 2          # f32 passthrough vs. bf16 pad

    def _need(tb):
        p1 = (2 * tb * Fp * x_bytes        # x tile (double-buffered)
              + Fp * Hp * 2                # W1 (single buffer, bf16)
              + 4 * Hp * 4                 # b1 + gamma/beta
              + 2 * tb * Hp * 2            # h_act out tile (double, bf16)
              + 2 * 2 * Hp * 4             # scale/shift out
              + 2 * Hp * 4)                # sum/sumsq scratch
        p2 = (2 * tb * Hp * 2              # h_act in tile (double, bf16)
              + Hp * Cp * 2                # W2 (single buffer, bf16)
              + 2 * Hp * 4 + Cp * 4        # scale/shift + b2
              + 2 * tb * Hp * 4            # h out tile
              + 2 * tb * Cp * 4)           # y out tile
        return max(p1, p2)

    tb = _round_up(min(batch_tile, _round_up(B, 16)), 16)
    while tb > 16 and _need(tb) > (vmem_limit * 7) // 8:
        tb = max(16, _round_up(tb // 2, 16))
    # TODO(synk): K-tile over F (stream W1 blocks) when Fp*Hp*2 alone exceeds
    # the VMEM budget; not needed for typical DDC feature sizes.

    Bp = _round_up(B, tb)
    n_tiles = Bp // tb
    n_pad = Bp - B

    bf16, f32 = jnp.bfloat16, jnp.float32

    if Fp == F and Bp == B:
        x_in = x            # no wrapper pad pass; in-kernel cast to bf16
    else:
        x_in = jnp.zeros((Bp, Fp), bf16).at[:B, :F].set(x.astype(bf16))

    w1_p = jnp.zeros((Fp, Hp), bf16).at[:F, :H].set(w1.astype(bf16))
    w2_p = jnp.zeros((Hp, Cp), bf16).at[:H, :C].set(w2.astype(bf16))
    b1_p = jnp.zeros((1, Hp), f32).at[0, :H].set(b1.reshape(-1))
    gb_p = (jnp.zeros((2, Hp), f32)
            .at[0, :H].set(gamma.reshape(-1))
            .at[1, :H].set(beta.reshape(-1)))
    # Padded classes get a huge negative bias so softmax assigns them ~0.
    b2_p = jnp.full((1, Cp), -1e9, f32).at[0, :C].set(b2.reshape(-1))

    def cparams(sem):
        return pltpu.CompilerParams(dimension_semantics=(sem,),
                                    vmem_limit_bytes=vmem_limit)

    # ---- Pass 1: h_act tiles (bf16) + fused BN scale/shift ----------------
    h_act, scale_shift = pl.pallas_call(
        functools.partial(_hidden_stats_kernel, b_real=B, n_pad=n_pad, eps=eps),
        grid=(n_tiles,),
        in_specs=[
            pl.BlockSpec((tb, Fp), lambda i: (i, 0)),    # x tile (streamed)
            _resident_spec((Fp, Hp)),                    # W1
            _resident_spec((1, Hp)),                     # b1
            _resident_spec((2, Hp)),                     # gamma/beta packed
        ],
        out_specs=(
            pl.BlockSpec((tb, Hp), lambda i: (i, 0)),    # h_act tile (bf16)
            pl.BlockSpec((2, Hp), lambda i: (0, 0)),     # BN scale/shift
        ),
        out_shape=(
            jax.ShapeDtypeStruct((Bp, Hp), bf16),
            jax.ShapeDtypeStruct((2, Hp), f32),
        ),
        scratch_shapes=[pltpu.VMEM((1, Hp), f32),        # sum
                        pltpu.VMEM((1, Hp), f32)],       # sum of squares
        compiler_params=cparams("arbitrary"),
        cost_estimate=pl.CostEstimate(
            flops=2 * Bp * Fp * Hp + 4 * Bp * Hp,
            transcendentals=0,
            bytes_accessed=Bp * Fp * x_bytes + Fp * Hp * 2 + Bp * Hp * 2),
    )(x_in, w1_p, b1_p, gb_p)

    # ---- Pass 2: normalize (FMA) + clustering + softmax -------------------
    h_pad, y_pad = pl.pallas_call(
        _cluster_kernel,
        grid=(n_tiles,),
        in_specs=[
            _resident_spec((2, Hp)),                     # BN scale/shift
            pl.BlockSpec((tb, Hp), lambda i: (i, 0)),    # h_act tile (bf16)
            _resident_spec((Hp, Cp)),                    # W2
            _resident_spec((1, Cp)),                     # b2
        ],
        out_specs=(
            pl.BlockSpec((tb, Hp), lambda i: (i, 0)),    # h tile
            pl.BlockSpec((tb, Cp), lambda i: (i, 0)),    # y tile
        ),
        out_shape=(
            jax.ShapeDtypeStruct((Bp, Hp), f32),
            jax.ShapeDtypeStruct((Bp, Cp), f32),
        ),
        compiler_params=cparams("parallel"),
        cost_estimate=pl.CostEstimate(
            flops=2 * Bp * Hp * Cp + 4 * Bp * Hp + 5 * Bp * Cp,
            transcendentals=Bp * Cp,
            bytes_accessed=Bp * Hp * 2 + Hp * Cp * 2 + Bp * Hp * 4 + Bp * Cp * 4),
    )(scale_shift, h_act, w2_p, b2_p)

    # TODO(synk): BatchNorm1d running_mean/running_var buffers are not updated
    # or emitted (forward returns only (y, h), matching DDCModule.forward).
    # TODO(synk): v7x megacore — pass 1 could keep per-core partial stats on a
    # 'parallel' batch axis and reduce them in pass 2 for ~2x on that pass.
    return y_pad[:B, :C], h_pad[:B, :H]


def init_params(key, in_features, hidden_dim, num_cluster):
    """Deterministic init mimicking nn.Linear defaults (uniform +-1/sqrt(fan_in))."""
    k1, k2, k3, k4 = jax.random.split(key, 4)
    bound1 = 1.0 / math.sqrt(in_features)
    w1 = jax.random.uniform(k1, (in_features, hidden_dim), jnp.float32,
                            -bound1, bound1)
    b1 = jax.random.uniform(k2, (1, hidden_dim), jnp.float32, -bound1, bound1)
    gamma = jnp.ones((1, hidden_dim), jnp.float32)   # BatchNorm1d weight
    beta = jnp.zeros((1, hidden_dim), jnp.float32)   # BatchNorm1d bias
    bound2 = 1.0 / math.sqrt(hidden_dim)
    w2 = jax.random.uniform(k3, (hidden_dim, num_cluster), jnp.float32,
                            -bound2, bound2)
    b2 = jax.random.uniform(k4, (1, num_cluster), jnp.float32, -bound2, bound2)
    return w1, b1, gamma, beta, w2, b2


if __name__ == "__main__":
    # Small demo shapes; batch_tile=16 forces the multi-tile + batch-padding
    # correction path (28 rows -> 2 tiles of 16, last tile has 4 padding rows).
    B, in_features, hidden_dim, num_cluster = 28, 32, 32, 8

    key = jax.random.PRNGKey(0)
    kx, kp = jax.random.split(key)
    x = jax.random.normal(kx, (B, in_features), jnp.float32)
    params = init_params(kp, in_features, hidden_dim, num_cluster)

    fwd = jax.jit(functools.partial(ddc_forward, batch_tile=16))
    y, h = fwd(x, *params)
    jax.block_until_ready((y, h))

    # Pure-JAX reference (bf16 only on the MXU inputs, like the kernel's
    # matmuls; the kernel additionally stores h_act in bf16, hence ~1e-2 tol).
    w1, b1, gamma, beta, w2, b2 = params
    h_act = jnp.maximum(
        jnp.dot(x.astype(jnp.bfloat16), w1.astype(jnp.bfloat16),
                preferred_element_type=jnp.float32) + b1, 0.0)
    mean = jnp.mean(h_act, axis=0, keepdims=True)
    var = jnp.mean((h_act - mean) ** 2, axis=0, keepdims=True)
    h_ref = (h_act - mean) * jax.lax.rsqrt(var + 1e-5) * gamma + beta
    logits = jnp.dot(h_ref.astype(jnp.bfloat16), w2.astype(jnp.bfloat16),
                     preferred_element_type=jnp.float32) + b2
    y_ref = jax.nn.softmax(logits, axis=1)

    assert y.shape == (B, num_cluster) and h.shape == (B, hidden_dim)
    assert jnp.allclose(h, h_ref, atol=3e-2, rtol=3e-2), \
        float(jnp.max(jnp.abs(h - h_ref)))
    assert jnp.allclose(y, y_ref, atol=1e-2, rtol=1e-2), \
        float(jnp.max(jnp.abs(y - y_ref)))
    assert jnp.allclose(jnp.sum(y, axis=1), 1.0, atol=1e-3)
    assert bool(jnp.all(y >= 0.0))

    print("KERNEL_OK")
</pallas_src>

<mosaic_0001>
module attributes {stable_mosaic.version = 11 : i64} {
  func.func @_hidden_stats_kernel(%arg0: i32, %arg1: memref<16x128xbf16, #tpu.memory_space<vmem>>, %arg2: memref<128x128xbf16, #tpu.memory_space<vmem>>, %arg3: memref<1x128xf32, #tpu.memory_space<vmem>>, %arg4: memref<2x128xf32, #tpu.memory_space<vmem>>, %arg5: memref<16x128xbf16, #tpu.memory_space<vmem>>, %arg6: memref<2x128xf32, #tpu.memory_space<vmem>>, %arg7: memref<1x128xf32, #tpu.memory_space<vmem>>, %arg8: memref<1x128xf32, #tpu.memory_space<vmem>>) attributes {dimension_semantics = [#tpu.dimension_semantics<arbitrary>], iteration_bounds = array<i64: 2>, scalar_prefetch = 0 : i64, scratch_operands = 2 : i64, tpu.core_type = #tpu.core_type<tc>, window_params = [{transform_indices = @transform_0, window_bounds = array<i64: 16, 128>}, {pipeline_mode = #tpu.pipeline_mode<synchronous>, transform_indices = @transform_1, window_bounds = array<i64: 128, 128>}, {pipeline_mode = #tpu.pipeline_mode<synchronous>, transform_indices = @transform_2, window_bounds = array<i64: 1, 128>}, {pipeline_mode = #tpu.pipeline_mode<synchronous>, transform_indices = @transform_3, window_bounds = array<i64: 2, 128>}, {transform_indices = @transform_4, window_bounds = array<i64: 16, 128>}, {pipeline_mode = #tpu.pipeline_mode<synchronous>, transform_indices = @transform_5, window_bounds = array<i64: 2, 128>}]} {
    %c0_i32 = arith.constant 0 : i32
    %0 = arith.cmpi eq, %arg0, %c0_i32 : i32
    %1 = arith.extui %0 : i1 to i32
    %c0_i32_0 = arith.constant 0 : i32
    %2 = arith.cmpi ne, %1, %c0_i32_0 : i32
    scf.if %2 {
      %cst_20 = arith.constant 0.000000e+00 : f32
      %27 = vector.broadcast %cst_20 : f32 to vector<1x128xf32>
      %c0_21 = arith.constant 0 : index
      %c0_22 = arith.constant 0 : index
      %28 = vector.load %arg7[%c0_21, %c0_22] : memref<1x128xf32, #tpu.memory_space<vmem>>, vector<1x128xf32>
      tpu.vector_store %arg7[%c0_21, %c0_22], %27 {strides = array<i32>} : memref<1x128xf32, #tpu.memory_space<vmem>>, vector<1x128xf32>,
      %cst_23 = arith.constant 0.000000e+00 : f32
      %29 = vector.broadcast %cst_23 : f32 to vector<1x128xf32>
      %c0_24 = arith.constant 0 : index
      %c0_25 = arith.constant 0 : index
      %30 = vector.load %arg8[%c0_24, %c0_25] : memref<1x128xf32, #tpu.memory_space<vmem>>, vector<1x128xf32>
      tpu.vector_store %arg8[%c0_24, %c0_25], %29 {strides = array<i32>} : memref<1x128xf32, #tpu.memory_space<vmem>>, vector<1x128xf32>,
    } else {
    }
    %c0 = arith.constant 0 : index
    %c0_1 = arith.constant 0 : index
    %3 = vector.load %arg1[%c0, %c0_1] : memref<16x128xbf16, #tpu.memory_space<vmem>>, vector<16x128xbf16>
    %c0_2 = arith.constant 0 : index
    %c0_3 = arith.constant 0 : index
    %4 = vector.load %arg2[%c0_2, %c0_3] : memref<128x128xbf16, #tpu.memory_space<vmem>>, vector<128x128xbf16>
    %cst = arith.constant dense<0.000000e+00> : vector<16x128xf32>
    %5 = tpu.matmul %3, %4, %cst {dimension_numbers = #tpu.dot_dimension_numbers<[1], [0], [0], [1], [0, 0, 1, 1], [], []>} : vector<16x128xbf16>, vector<128x128xbf16>, vector<16x128xf32> -> vector<16x128xf32>
    %c0_4 = arith.constant 0 : index
    %c0_5 = arith.constant 0 : index
    %6 = vector.load %arg3[%c0_4, %c0_5] : memref<1x128xf32, #tpu.memory_space<vmem>>, vector<1x128xf32>
    %7 = vector.broadcast %6 : vector<1x128xf32> to vector<16x128xf32>
    %8 = arith.addf %5, %7 : vector<16x128xf32>
    %cst_6 = arith.constant 0.000000e+00 : f32
    %9 = vector.broadcast %cst_6 : f32 to vector<16x128xf32>
    %10 = arith.maximumf %8, %9 : vector<16x128xf32>
    %11 = arith.truncf %10 : vector<16x128xf32> to vector<16x128xbf16>
    %c0_7 = arith.constant 0 : index
    %c0_8 = arith.constant 0 : index
    %12 = vector.load %arg5[%c0_7, %c0_8] : memref<16x128xbf16, #tpu.memory_space<vmem>>, vector<16x128xbf16>
    tpu.vector_store %arg5[%c0_7, %c0_8], %11 {strides = array<i32>} : memref<16x128xbf16, #tpu.memory_space<vmem>>, vector<16x128xbf16>,
    %c0_9 = arith.constant 0 : index
    %c0_10 = arith.constant 0 : index
    %13 = vector.load %arg7[%c0_9, %c0_10] : memref<1x128xf32, #tpu.memory_space<vmem>>, vector<1x128xf32>
    %cst_11 = arith.constant dense<0.000000e+00> : vector<128xf32>
    %14 = vector.multi_reduction <add>, %10, %cst_11 [0] : vector<16x128xf32> to vector<128xf32>
    %15 = vector.shape_cast %14 : vector<128xf32> to vector<1x128xf32>
    %16 = arith.addf %13, %15 : vector<1x128xf32>
    %c0_12 = arith.constant 0 : index
    %c0_13 = arith.constant 0 : index
    %17 = vector.load %arg7[%c0_12, %c0_13] : memref<1x128xf32, #tpu.memory_space<vmem>>, vector<1x128xf32>
    tpu.vector_store %arg7[%c0_12, %c0_13], %16 {strides = array<i32>} : memref<1x128xf32, #tpu.memory_space<vmem>>, vector<1x128xf32>,
    %c0_14 = arith.constant 0 : index
    %c0_15 = arith.constant 0 : index
    %18 = vector.load %arg8[%c0_14, %c0_15] : memref<1x128xf32, #tpu.memory_space<vmem>>, vector<1x128xf32>
    %19 = arith.mulf %10, %10 : vector<16x128xf32>
    %cst_16 = arith.constant dense<0.000000e+00> : vector<128xf32>
    %20 = vector.multi_reduction <add>, %19, %cst_16 [0] : vector<16x128xf32> to vector<128xf32>
    %21 = vector.shape_cast %20 : vector<128xf32> to vector<1x128xf32>
    %22 = arith.addf %18, %21 : vector<1x128xf32>
    %c0_17 = arith.constant 0 : index
    %c0_18 = arith.constant 0 : index
    %23 = vector.load %arg8[%c0_17, %c0_18] : memref<1x128xf32, #tpu.memory_space<vmem>>, vector<1x128xf32>
    tpu.vector_store %arg8[%c0_17, %c0_18], %22 {strides = array<i32>} : memref<1x128xf32, #tpu.memory_space<vmem>>, vector<1x128xf32>,
    %c1_i32 = arith.constant 1 : i32
    %24 = arith.cmpi eq, %arg0, %c1_i32 : i32
    %25 = arith.extui %24 : i1 to i32
    %c0_i32_19 = arith.constant 0 : i32
    %26 = arith.cmpi ne, %25, %c0_i32_19 : i32
    scf.if %26 {
      %c0_20 = arith.constant 0 : index
      %c0_21 = arith.constant 0 : index
      %27 = vector.load %arg7[%c0_20, %c0_21] : memref<1x128xf32, #tpu.memory_space<vmem>>, vector<1x128xf32>
      %c0_22 = arith.constant 0 : index
      %c0_23 = arith.constant 0 : index
      %28 = vector.load %arg8[%c0_22, %c0_23] : memref<1x128xf32, #tpu.memory_space<vmem>>, vector<1x128xf32>
      %c0_24 = arith.constant 0 : index
      %c0_25 = arith.constant 0 : index
      %29 = vector.load %arg3[%c0_24, %c0_25] : memref<1x128xf32, #tpu.memory_space<vmem>>, vector<1x128xf32>
      %cst_26 = arith.constant 0.000000e+00 : f32
      %30 = vector.broadcast %cst_26 : f32 to vector<1x128xf32>
      %31 = arith.maximumf %29, %30 : vector<1x128xf32>
      %cst_27 = arith.constant 4.000000e+00 : f32
      %32 = vector.broadcast %cst_27 : f32 to vector<1x128xf32>
      %33 = arith.mulf %32, %31 : vector<1x128xf32>
      %34 = arith.subf %27, %33 : vector<1x128xf32>
      %35 = arith.mulf %31, %31 : vector<1x128xf32>
      %cst_28 = arith.constant 4.000000e+00 : f32
      %36 = vector.broadcast %cst_28 : f32 to vector<1x128xf32>
      %37 = arith.mulf %36, %35 : vector<1x128xf32>
      %38 = arith.subf %28, %37 : vector<1x128xf32>
      %cst_29 = arith.constant 0.0357142873 : f32
      %39 = vector.broadcast %cst_29 : f32 to vector<1x128xf32>
      %40 = arith.mulf %34, %39 : vector<1x128xf32>
      %cst_30 = arith.constant 0.0357142873 : f32
      %41 = vector.broadcast %cst_30 : f32 to vector<1x128xf32>
      %42 = arith.mulf %38, %41 : vector<1x128xf32>
      %43 = arith.mulf %40, %40 : vector<1x128xf32>
      %44 = arith.subf %42, %43 : vector<1x128xf32>
      %cst_31 = arith.constant 0.000000e+00 : f32
      %45 = vector.broadcast %cst_31 : f32 to vector<1x128xf32>
      %46 = arith.maximumf %44, %45 : vector<1x128xf32>
      %c0_32 = arith.constant 0 : index
      %c0_33 = arith.constant 0 : index
      %47 = vector.load %arg4[%c0_32, %c0_33] : memref<2x128xf32, #tpu.memory_space<vmem>>, vector<1x128xf32>
      %cst_34 = arith.constant 9.99999974E-6 : f32
      %48 = vector.broadcast %cst_34 : f32 to vector<1x128xf32>
      %49 = arith.addf %46, %48 : vector<1x128xf32>
      %50 = math.rsqrt %49 : vector<1x128xf32>
      %51 = arith.mulf %47, %50 : vector<1x128xf32>
      %c1 = arith.constant 1 : index
      %c0_35 = arith.constant 0 : index
      %52 = vector.load %arg4[%c1, %c0_35] : memref<2x128xf32, #tpu.memory_space<vmem>>, vector<1x128xf32>
      %53 = arith.mulf %40, %51 : vector<1x128xf32>
      %54 = arith.subf %52, %53 : vector<1x128xf32>
      %c0_36 = arith.constant 0 : index
      %c0_37 = arith.constant 0 : index
      %55 = vector.load %arg6[%c0_36, %c0_37] : memref<2x128xf32, #tpu.memory_space<vmem>>, vector<1x128xf32>
      tpu.vector_store %arg6[%c0_36, %c0_37], %51 {strides = array<i32>} : memref<2x128xf32, #tpu.memory_space<vmem>>, vector<1x128xf32>,
      %c1_38 = arith.constant 1 : index
      %c0_39 = arith.constant 0 : index
      %56 = vector.load %arg6[%c1_38, %c0_39] : memref<2x128xf32, #tpu.memory_space<vmem>>, vector<1x128xf32>
      tpu.vector_store %arg6[%c1_38, %c0_39], %54 {strides = array<i32>} : memref<2x128xf32, #tpu.memory_space<vmem>>, vector<1x128xf32>,
    } else {
    }
    return
  }
  func.func @transform_0(%arg0: i32) -> (i32, i32) {
    %c0_i32 = arith.constant 0 : i32
    %c0_i32_0 = arith.constant 0 : i32
    return %arg0, %c0_i32 : i32, i32
  }
  func.func @transform_1(%arg0: i32) -> (i32, i32) {
    %c0_i32 = arith.constant 0 : i32
    %c0_i32_0 = arith.constant 0 : i32
    %c0_i32_1 = arith.constant 0 : i32
    return %c0_i32, %c0_i32_0 : i32, i32
  }
  func.func @transform_2(%arg0: i32) -> (i32, i32) {
    %c0_i32 = arith.constant 0 : i32
    %c0_i32_0 = arith.constant 0 : i32
    %c0_i32_1 = arith.constant 0 : i32
    return %c0_i32, %c0_i32_0 : i32, i32
  }
  func.func @transform_3(%arg0: i32) -> (i32, i32) {
    %c0_i32 = arith.constant 0 : i32
    %c0_i32_0 = arith.constant 0 : i32
    %c0_i32_1 = arith.constant 0 : i32
    return %c0_i32, %c0_i32_0 : i32, i32
  }
  func.func @transform_4(%arg0: i32) -> (i32, i32) {
    %c0_i32 = arith.constant 0 : i32
    %c0_i32_0 = arith.constant 0 : i32
    return %arg0, %c0_i32 : i32, i32
  }
  func.func @transform_5(%arg0: i32) -> (i32, i32) {
    %c0_i32 = arith.constant 0 : i32
    %c0_i32_0 = arith.constant 0 : i32
    %c0_i32_1 = arith.constant 0 : i32
    return %c0_i32, %c0_i32_0 : i32, i32
  }
}

module attributes {stable_mosaic.version = 11 : i64} {
  func.func @_cluster_kernel(%arg0: i32, %arg1: memref<2x128xf32, #tpu.memory_space<vmem>>, %arg2: memref<16x128xbf16, #tpu.memory_space<vmem>>, %arg3: memref<128x128xbf16, #tpu.memory_space<vmem>>, %arg4: memref<1x128xf32, #tpu.memory_space<vmem>>, %arg5: memref<16x128xf32, #tpu.memory_space<vmem>>, %arg6: memref<16x128xf32, #tpu.memory_space<vmem>>) attributes {dimension_semantics = [#tpu.dimension_semantics<parallel>], iteration_bounds = array<i64: 2>, scalar_prefetch = 0 : i64, scratch_operands = 0 : i64, tpu.core_type = #tpu.core_type<tc>, window_params = [{pipeline_mode = #tpu.pipeline_mode<synchronous>, transform_indices = @transform_0, window_bounds = array<i64: 2, 128>}, {transform_indices = @transform_1, window_bounds = array<i64: 16, 128>}, {pipeline_mode = #tpu.pipeline_mode<synchronous>, transform_indices = @transform_2, window_bounds = array<i64: 128, 128>}, {pipeline_mode = #tpu.pipeline_mode<synchronous>, transform_indices = @transform_3, window_bounds = array<i64: 1, 128>}, {transform_indices = @transform_4, window_bounds = array<i64: 16, 128>}, {transform_indices = @transform_5, window_bounds = array<i64: 16, 128>}]} {
    %c0 = arith.constant 0 : index
    %c0_0 = arith.constant 0 : index
    %0 = vector.load %arg1[%c0, %c0_0] : memref<2x128xf32, #tpu.memory_space<vmem>>, vector<1x128xf32>
    %c1 = arith.constant 1 : index
    %c0_1 = arith.constant 0 : index
    %1 = vector.load %arg1[%c1, %c0_1] : memref<2x128xf32, #tpu.memory_space<vmem>>, vector<1x128xf32>
    %c0_2 = arith.constant 0 : index
    %c0_3 = arith.constant 0 : index
    %2 = vector.load %arg2[%c0_2, %c0_3] : memref<16x128xbf16, #tpu.memory_space<vmem>>, vector<16x128xbf16>
    %3 = arith.extf %2 : vector<16x128xbf16> to vector<16x128xf32>
    %4 = vector.broadcast %0 : vector<1x128xf32> to vector<16x128xf32>
    %5 = arith.mulf %3, %4 : vector<16x128xf32>
    %6 = vector.broadcast %1 : vector<1x128xf32> to vector<16x128xf32>
    %7 = arith.addf %5, %6 : vector<16x128xf32>
    %c0_4 = arith.constant 0 : index
    %c0_5 = arith.constant 0 : index
    %8 = vector.load %arg5[%c0_4, %c0_5] : memref<16x128xf32, #tpu.memory_space<vmem>>, vector<16x128xf32>
    tpu.vector_store %arg5[%c0_4, %c0_5], %7 {strides = array<i32>} : memref<16x128xf32, #tpu.memory_space<vmem>>, vector<16x128xf32>,
    %9 = arith.truncf %7 : vector<16x128xf32> to vector<16x128xbf16>
    %c0_6 = arith.constant 0 : index
    %c0_7 = arith.constant 0 : index
    %10 = vector.load %arg3[%c0_6, %c0_7] : memref<128x128xbf16, #tpu.memory_space<vmem>>, vector<128x128xbf16>
    %cst = arith.constant dense<0.000000e+00> : vector<16x128xf32>
    %11 = tpu.matmul %9, %10, %cst {dimension_numbers = #tpu.dot_dimension_numbers<[1], [0], [0], [1], [0, 0, 1, 1], [], []>} : vector<16x128xbf16>, vector<128x128xbf16>, vector<16x128xf32> -> vector<16x128xf32>
    %c0_8 = arith.constant 0 : index
    %c0_9 = arith.constant 0 : index
    %12 = vector.load %arg4[%c0_8, %c0_9] : memref<1x128xf32, #tpu.memory_space<vmem>>, vector<1x128xf32>
    %13 = vector.broadcast %12 : vector<1x128xf32> to vector<16x128xf32>
    %14 = arith.addf %11, %13 : vector<16x128xf32>
    %cst_10 = arith.constant dense<0xFF800000> : vector<16xf32>
    %15 = vector.multi_reduction <maximumf>, %14, %cst_10 [1] : vector<16x128xf32> to vector<16xf32>
    %16 = vector.shape_cast %15 : vector<16xf32> to vector<16x1xf32>
    %17 = vector.broadcast %16 : vector<16x1xf32> to vector<16x128xf32>
    %18 = arith.subf %14, %17 : vector<16x128xf32>
    %19 = math.exp %18 : vector<16x128xf32>
    %cst_11 = arith.constant dense<0.000000e+00> : vector<16xf32>
    %20 = vector.multi_reduction <add>, %19, %cst_11 [1] : vector<16x128xf32> to vector<16xf32>
    %21 = vector.shape_cast %20 : vector<16xf32> to vector<16x1xf32>
    %22 = tpu.reciprocal %21 {approx = true} : vector<16x1xf32> -> vector<16x1xf32>
    %23 = arith.mulf %21, %22 : vector<16x1xf32>
    %cst_12 = arith.constant 2.000000e+00 : f32
    %24 = vector.broadcast %cst_12 : f32 to vector<16x1xf32>
    %25 = arith.subf %24, %23 : vector<16x1xf32>
    %26 = arith.mulf %22, %25 : vector<16x1xf32>
    %27 = vector.broadcast %26 : vector<16x1xf32> to vector<16x128xf32>
    %28 = arith.mulf %19, %27 : vector<16x128xf32>
    %c0_13 = arith.constant 0 : index
    %c0_14 = arith.constant 0 : index
    %29 = vector.load %arg6[%c0_13, %c0_14] : memref<16x128xf32, #tpu.memory_space<vmem>>, vector<16x128xf32>
    tpu.vector_store %arg6[%c0_13, %c0_14], %28 {strides = array<i32>} : memref<16x128xf32, #tpu.memory_space<vmem>>, vector<16x128xf32>,
    return
  }
  func.func @transform_0(%arg0: i32) -> (i32, i32) {
    %c0_i32 = arith.constant 0 : i32
    %c0_i32_0 = arith.constant 0 : i32
    %c0_i32_1 = arith.constant 0 : i32
    return %c0_i32, %c0_i32_0 : i32, i32
  }
  func.func @transform_1(%arg0: i32) -> (i32, i32) {
    %c0_i32 = arith.constant 0 : i32
    %c0_i32_0 = arith.constant 0 : i32
    return %arg0, %c0_i32 : i32, i32
  }
  func.func @transform_2(%arg0: i32) -> (i32, i32) {
    %c0_i32 = arith.constant 0 : i32
    %c0_i32_0 = arith.constant 0 : i32
    %c0_i32_1 = arith.constant 0 : i32
    return %c0_i32, %c0_i32_0 : i32, i32
  }
  func.func @transform_3(%arg0: i32) -> (i32, i32) {
    %c0_i32 = arith.constant 0 : i32
    %c0_i32_0 = arith.constant 0 : i32
    %c0_i32_1 = arith.constant 0 : i32
    return %c0_i32, %c0_i32_0 : i32, i32
  }
  func.func @transform_4(%arg0: i32) -> (i32, i32) {
    %c0_i32 = arith.constant 0 : i32
    %c0_i32_0 = arith.constant 0 : i32
    return %arg0, %c0_i32 : i32, i32
  }
  func.func @transform_5(%arg0: i32) -> (i32, i32) {
    %c0_i32 = arith.constant 0 : i32
    %c0_i32_0 = arith.constant 0 : i32
    return %arg0, %c0_i32 : i32, i32
  }
}

</mosaic_0001>

<llo_original>
// kernel: ddc_forward.2
$region0: #{ddc_forward.2}
  #allocation0 [shape = 'u32[]', space=smem, size = 0x4, offset = 0x4, fixed_abs, tag = 'smem constant byte address 0x4 - core index']
  #allocation1 [shape = 'u32[144,128]{1,0:T(1,128)}', space=vmem, size = 0x12000, scoped, tag = 'internal scratch']
  #allocation2 [shape = 'f32[1,128]{1,0:T(1,128)}', space=vmem, size = 0x200, scoped, tag = 'scratch operand']
  #allocation3 [shape = 'f32[1,128]{1,0:T(1,128)}', space=vmem, size = 0x200, scoped, tag = 'scratch operand']
  %s0 = inlined_call_operand.vmem [shape: bf16[32,128], index: 0, kind: input, shape index: {}]
  %s1 = inlined_call_operand.vmem [shape: bf16[128,128], index: 1, kind: input, shape index: {}]
  %s2 = inlined_call_operand.vmem [shape: f32[1,128], index: 2, kind: input, shape index: {}]
  %s3 = inlined_call_operand.vmem [shape: f32[2,128], index: 3, kind: input, shape index: {}]
  %s4 = inlined_call_operand.vmem [shape: bf16[32,128], index: 4, kind: output, shape index: {0}]
  %s5 = inlined_call_operand.vmem [shape: f32[2,128], index: 5, kind: output, shape index: {1}]
  %6 = xla_tuple %s4, %s5
  %s7 = sld [smem:[#allocation0]]
  $region65: #{ddc_forward.2} parent=0
    _
  %s9 = ssub.s32 1, %s7
  %s10 = scalar_select 0, %s9, %s7
  loop: start=0, step=1, limit=4
  $region2: #{ddc_forward.2} parent=0 // loop_pre_header
    _
  $region3: #{ddc_forward.2} parent=0 // loop_header
    %s12 = sphi 0, %s16
    %p13 = scmp.ge.s32.totalorder %s12, 4
    %s22 = sphi 0, %s24
    %s25 = sphi 0, %s22
    %s26 = sphi 0, %s25
    %s42 = sphi 0, %s26
    %s46 = sphi 0, %s46
    %s48 = sphi 0, %s46
    %s49 = sphi 0, %s48
    %s63 = sphi 0, %s49
    %s67 = sphi 0, %s67
    %s69 = sphi 0, %s67
    %s70 = sphi 0, %s69
    %s84 = sphi 0, %s70
    %s88 = sphi 0, %s88
    %s90 = sphi 0, %s88
    %s91 = sphi 0, %s90
    %s105 = sphi 0, %s91
    %s111 = sphi 0, %s113
    %s114 = sphi 0, %s111
    %s115 = sphi 0, %s114
    %s131 = sphi 0, %s115
    %s135 = sphi 0, %s135
    %s137 = sphi 0, %s135
    %s138 = sphi 0, %s137
    %s152 = sphi 0, %s138
  $region4: #{ddc_forward.2} parent=0 // loop_header_branch
    %15 = sbr.rel (%p13) target = $region8
  $region5: #{ddc_forward.2} parent=0 // loop_body
    %s17 = ssub.s32 %s12, 1
    %s18 = ssub.s32 %s12, 2
    %s19 = sadd.s32 %s12, 1
    %s20 = ssub.s32 %s12, %s19
    %p21 = scmp.eq.s32.totalorder %s20, 0
    %s23 = sadd.s32 %s22, 1
    %s24 = scalar_select %p21, %s22, %s23
    %p27 = pneg %p21
    %p28 = scmp.eq.s32.totalorder %s12, 1
    %p29 = por %p27, %p28
    %p30 = scmp.ne.s32.totalorder %s22, %s25
    %p31 = scmp.eq.s32.totalorder %s12, 0
    %p32 = por %p30, %p31
    %p33 = scmp.ne.s32.totalorder %s22, %s25
    %p34 = scmp.eq.s32.totalorder %s17, 1
    %p35 = por %p33, %p34
    %p36 = scmp.ne.s32.totalorder %s25, %s26
    %p37 = scmp.eq.s32.totalorder %s17, 0
    %p38 = por %p36, %p37
    %p39 = scmp.ne.s32.totalorder %s25, %s26
    %p40 = scmp.eq.s32.totalorder %s18, 1
    %p41 = por %p39, %p40
    %p43 = scmp.ne.s32.totalorder %s26, %s42
    %p44 = scmp.eq.s32.totalorder %s18, 0
    %p45 = por %p43, %p44
    %s47 = sadd.s32 %s46, 1
    %p50 = scmp.eq.s32.totalorder %s12, 1
    %p51 = scmp.ne.s32.totalorder %s46, %s48
    %p52 = scmp.eq.s32.totalorder %s12, 0
    %p53 = por %p51, %p52
    %p54 = scmp.ne.s32.totalorder %s46, %s48
    %p55 = scmp.eq.s32.totalorder %s17, 1
    %p56 = por %p54, %p55
    %p57 = scmp.ne.s32.totalorder %s48, %s49
    %p58 = scmp.eq.s32.totalorder %s17, 0
    %p59 = por %p57, %p58
    %p60 = scmp.ne.s32.totalorder %s48, %s49
    %p61 = scmp.eq.s32.totalorder %s18, 1
    %p62 = por %p60, %p61
    %p64 = scmp.ne.s32.totalorder %s49, %s63
    %p65 = scmp.eq.s32.totalorder %s18, 0
    %p66 = por %p64, %p65
    %s68 = sadd.s32 %s67, 1
    %p71 = scmp.eq.s32.totalorder %s12, 1
    %p72 = scmp.ne.s32.totalorder %s67, %s69
    %p73 = scmp.eq.s32.totalorder %s12, 0
    %p74 = por %p72, %p73
    %p75 = scmp.ne.s32.totalorder %s67, %s69
    %p76 = scmp.eq.s32.totalorder %s17, 1
    %p77 = por %p75, %p76
    %p78 = scmp.ne.s32.totalorder %s69, %s70
    %p79 = scmp.eq.s32.totalorder %s17, 0
    %p80 = por %p78, %p79
    %p81 = scmp.ne.s32.totalorder %s69, %s70
    %p82 = scmp.eq.s32.totalorder %s18, 1
    %p83 = por %p81, %p82
    %p85 = scmp.ne.s32.totalorder %s70, %s84
    %p86 = scmp.eq.s32.totalorder %s18, 0
    %p87 = por %p85, %p86
    %s89 = sadd.s32 %s88, 1
    %p92 = scmp.eq.s32.totalorder %s12, 1
    %p93 = scmp.ne.s32.totalorder %s88, %s90
    %p94 = scmp.eq.s32.totalorder %s12, 0
    %p95 = por %p93, %p94
    %p96 = scmp.ne.s32.totalorder %s88, %s90
    %p97 = scmp.eq.s32.totalorder %s17, 1
    %p98 = por %p96, %p97
    %p99 = scmp.ne.s32.totalorder %s90, %s91
    %p100 = scmp.eq.s32.totalorder %s17, 0
    %p101 = por %p99, %p100
    %p102 = scmp.ne.s32.totalorder %s90, %s91
    %p103 = scmp.eq.s32.totalorder %s18, 1
    %p104 = por %p102, %p103
    %p106 = scmp.ne.s32.totalorder %s91, %s105
    %p107 = scmp.eq.s32.totalorder %s18, 0
    %p108 = por %p106, %p107
    %s109 = ssub.s32 %s12, %s19
    %p110 = scmp.eq.s32.totalorder %s109, 0
    %s112 = sadd.s32 %s111, 1
    %s113 = scalar_select %p110, %s111, %s112
    %p116 = pneg %p110
    %p117 = scmp.eq.s32.totalorder %s12, 1
    %p118 = por %p116, %p117
    %p119 = scmp.ne.s32.totalorder %s111, %s114
    %p120 = scmp.eq.s32.totalorder %s12, 0
    %p121 = por %p119, %p120
    %p122 = scmp.ne.s32.totalorder %s111, %s114
    %p123 = scmp.eq.s32.totalorder %s17, 1
    %p124 = por %p122, %p123
    %p125 = scmp.ne.s32.totalorder %s114, %s115
    %p126 = scmp.eq.s32.totalorder %s17, 0
    %p127 = por %p125, %p126
    %p128 = scmp.ne.s32.totalorder %s114, %s115
    %p129 = scmp.eq.s32.totalorder %s18, 1
    %p130 = por %p128, %p129
    %p132 = scmp.ne.s32.totalorder %s115, %s131
    %p133 = scmp.eq.s32.totalorder %s18, 0
    %p134 = por %p132, %p133
    %s136 = sadd.s32 %s135, 1
    %p139 = scmp.eq.s32.totalorder %s12, 1
    %p140 = scmp.ne.s32.totalorder %s135, %s137
    %p141 = scmp.eq.s32.totalorder %s12, 0
    %p142 = por %p140, %p141
    %p143 = scmp.ne.s32.totalorder %s135, %s137
    %p144 = scmp.eq.s32.totalorder %s17, 1
    %p145 = por %p143, %p144
    %p146 = scmp.ne.s32.totalorder %s137, %s138
    %p147 = scmp.eq.s32.totalorder %s17, 0
    %p148 = por %p146, %p147
    %p149 = scmp.ne.s32.totalorder %s137, %s138
    %p150 = scmp.eq.s32.totalorder %s18, 1
    %p151 = por %p149, %p150
    %p153 = scmp.ne.s32.totalorder %s138, %s152
    %p154 = scmp.eq.s32.totalorder %s18, 0
    %p155 = por %p153, %p154
    %p156 = scmp.le.s32.totalorder 1, %s12
    %p157 = scmp.lt.s32.totalorder %s12, 3
    %p158 = pnand %p156, %p157
    %p159 = pneg %p158
    // Predicated region
    $region9: #{ddc_forward.2} parent=5 // pred_check
      _
    $region10: #{ddc_forward.2} parent=5 // pred_check_branch
      %161 = sbr.rel (%p158) target = $region12
    $region11: #{ddc_forward.2} parent=5 // pred_region
      %s162 = ssub.s32 %s12, 1
      // Predicated region
      $region13: #{ddc_forward.2} parent=11 // pred_check
        %p163 = pneg %p59
      $region14: #{ddc_forward.2} parent=11 // pred_check_branch
        %165 = sbr.rel (%p163) target = $region16
      $region15: #{ddc_forward.2} parent=11 // pred_region
        _
      $region16: #{ddc_forward.2} parent=11 // pred_fallthru
        _
      // Predicated region
      $region17: #{ddc_forward.2} parent=11 // pred_check
        %p166 = pneg %p80
      $region18: #{ddc_forward.2} parent=11 // pred_check_branch
        %168 = sbr.rel (%p166) target = $region20
      $region19: #{ddc_forward.2} parent=11 // pred_region
        _
      $region20: #{ddc_forward.2} parent=11 // pred_fallthru
        _
      // Predicated region
      $region21: #{ddc_forward.2} parent=11 // pred_check
        %p169 = pneg %p101
      $region22: #{ddc_forward.2} parent=11 // pred_check_branch
        %171 = sbr.rel (%p169) target = $region24
      $region23: #{ddc_forward.2} parent=11 // pred_region
        _
      $region24: #{ddc_forward.2} parent=11 // pred_fallthru
        _
    $region12: #{ddc_forward.2} parent=5 // pred_fallthru
      _
    %p172 = scmp.lt.s32.totalorder %s12, 2
    // Predicated region
    $region25: #{ddc_forward.2} parent=5 // pred_check
      %p173 = pneg %p172
    $region26: #{ddc_forward.2} parent=5 // pred_check_branch
      %175 = sbr.rel (%p173) target = $region28
    $region27: #{ddc_forward.2} parent=5 // pred_region
      // Predicated region
      $region29: #{ddc_forward.2} parent=27 // pred_check
        %p176 = pneg %p32
      $region30: #{ddc_forward.2} parent=27 // pred_check_branch
        %178 = sbr.rel (%p176) target = $region32
      $region31: #{ddc_forward.2} parent=27 // pred_region
        %s179 = smul.u32 2, %s12
        %p180 = scmp.lt.s32.totalorder %s179, 3
        %s181 = scalar_select %p180, %s179, 3
        %s182 = smul.addr %s181, 4
        %s183 = scalar_lea.vmem %s0, %s182
        %s184 = smul.u32 2, %s12
      $region32: #{ddc_forward.2} parent=27 // pred_fallthru
        _
    $region28: #{ddc_forward.2} parent=5 // pred_fallthru
      _
    %p185 = scmp.le.s32.totalorder 1, %s12
    %p186 = scmp.lt.s32.totalorder %s12, 3
    %p187 = pnand %p185, %p186
    %p188 = pneg %p187
    // Predicated region
    $region33: #{ddc_forward.2} parent=5 // pred_check
      _
    $region34: #{ddc_forward.2} parent=5 // pred_check_branch
      %190 = sbr.rel (%p187) target = $region36
    $region35: #{ddc_forward.2} parent=5 // pred_region
      %s191 = ssub.s32 %s12, 1
      %s192 = smul.u32 2, %s17
      %p193 = scmp.lt.s32.totalorder %s192, 3
      %s194 = scalar_select %p193, %s192, 3
      %s195 = smul.addr %s194, 4
      %s196 = scalar_lea.vmem %s0, %s195
      %p197 = pneg %p38
      %p198 = pneg %p35
      %p199 = pneg %p59
      %p200 = pneg %p56
      %p201 = pneg %p80
      %p202 = pneg %p77
      %p203 = pneg %p101
      %p204 = pneg %p98
      %p205 = pneg %p127
      %p206 = pneg %p124
      %s207 = smul.u32 2, %s17
      %p208 = scmp.lt.s32.totalorder %s207, 3
      %s209 = scalar_select %p208, %s207, 3
      %s210 = smul.addr %s209, 4
      %s211 = scalar_lea.vmem %s4, %s210
      %p212 = pneg %p148
      %p213 = pneg %p145
      %s214 = smul.u32 2, %s17
      %p215 = scmp.lt.s32.totalorder %s214, 3
      %s216 = scalar_select %p215, %s214, 3
      %s217 = smul.addr %s216, 4
      %s218 = scalar_lea.vmem %s0, %s217
      %s219 = smul.u32 2, %s17
      %s220 = smul.u32 2, %s17
      %p221 = scmp.lt.s32.totalorder %s220, 3
      %s222 = scalar_select %p221, %s220, 3
      %s223 = smul.addr %s222, 4
      %s224 = scalar_lea.vmem %s4, %s223
      %s225 = smul.u32 2, %s17
      %p227 = scmp.eq.s32.totalorder %s17, 0
      // Predicated region
      $region37: #{ddc_forward.2} parent=35 // pred_check
        %p228 = pneg %p227
      $region38: #{ddc_forward.2} parent=35 // pred_check_branch
        %230 = sbr.rel (%p228) target = $region40
      $region39: #{ddc_forward.2} parent=35 // pred_region
        %231 = vst [vmem:[#allocation2] sm:$0x1] 0.0
        %232 = vst [vmem:[#allocation3] sm:$0x1] 0.0
      $region40: #{ddc_forward.2} parent=35 // pred_fallthru
        _
      %v233 = vld [vmem:[%s218] sm:$0xf]
      %v234 = vld [vmem:[%s218 + $0x4] sm:$0xf]
      %v235 = vld [vmem:[%s1] sm:$0xf]
      %v236 = vld [vmem:[%s1 + $0x4] sm:$0xf]
      %v237 = vld [vmem:[%s1 + $0x8] sm:$0xf]
      %v238 = vld [vmem:[%s1 + $0xc] sm:$0xf]
      %v239 = vld [vmem:[%s1 + $0x10] sm:$0xf]
      %v240 = vld [vmem:[%s1 + $0x14] sm:$0xf]
      %v241 = vld [vmem:[%s1 + $0x18] sm:$0xf]
      %v242 = vld [vmem:[%s1 + $0x1c] sm:$0xf]
      %v243 = vld [vmem:[%s1 + $0x20] sm:$0xf]
      %v244 = vld [vmem:[%s1 + $0x24] sm:$0xf]
      %v245 = vld [vmem:[%s1 + $0x28] sm:$0xf]
      %v246 = vld [vmem:[%s1 + $0x2c] sm:$0xf]
      %v247 = vld [vmem:[%s1 + $0x30] sm:$0xf]
      %v248 = vld [vmem:[%s1 + $0x34] sm:$0xf]
      %v249 = vld [vmem:[%s1 + $0x38] sm:$0xf]
      %v250 = vld [vmem:[%s1 + $0x3c] sm:$0xf]
      %v251 = vld [vmem:[%s2] sm:$0x1]
      %v253 = vlaneseq
      %v254 = vshrl.u32 %v253, 7
      %v255 = vsub.s32 0, %v254
      %v256 = vrot.slane %v251, %v255
      %v260 = vunpack.c.l.b16 %v233
      %v261 = vunpack.c.l.b16 %v234
      %v262 = vpack.c.b16 %v261, %v260
      %v280 = vunpack.c.l.b16 %v235
      %v281 = vunpack.c.l.b16 %v236
      %v282 = vunpack.c.l.b16 %v237
      %v283 = vunpack.c.l.b16 %v238
      %v284 = vunpack.c.l.b16 %v239
      %v285 = vunpack.c.l.b16 %v240
      %v286 = vunpack.c.l.b16 %v241
      %v287 = vunpack.c.l.b16 %v242
      %v288 = vunpack.c.l.b16 %v243
      %v289 = vunpack.c.l.b16 %v244
      %v290 = vunpack.c.l.b16 %v245
      %v291 = vunpack.c.l.b16 %v246
      %v292 = vunpack.c.l.b16 %v247
      %v293 = vunpack.c.l.b16 %v248
      %v294 = vunpack.c.l.b16 %v249
      %v295 = vunpack.c.l.b16 %v250
      %v296 = vpack.c.b16 %v281, %v280
      %v297 = vpack.c.b16 %v283, %v282
      %v298 = vpack.c.b16 %v285, %v284
      %v299 = vpack.c.b16 %v287, %v286
      %v300 = vpack.c.b16 %v289, %v288
      %v301 = vpack.c.b16 %v291, %v290
      %v302 = vpack.c.b16 %v293, %v292
      %v303 = vpack.c.b16 %v295, %v294
      %312 = vmatprep.subr.bf16.mxu0 0
      %313 = vmatpush1.bf16.msra.mxu0 %v303
      %314 = vmatprep.subr.bf16.mxu0 0
      %315 = vmatpush1.bf16.msra.mxu0 %v302
      %316 = vmatprep.subr.bf16.mxu0 0
      %317 = vmatpush1.bf16.msra.mxu0 %v301
      %318 = vmatprep.subr.bf16.mxu0 0
      %319 = vmatpush1.bf16.msra.mxu0 %v300
      %320 = vmatprep.subr.bf16.mxu0 0
      %321 = vmatpush1.bf16.msra.mxu0 %v299
      %322 = vmatprep.subr.bf16.mxu0 0
      %323 = vmatpush1.bf16.msra.mxu0 %v298
      %324 = vmatprep.subr.bf16.mxu0 0
      %325 = vmatpush1.bf16.msra.mxu0 %v297
      %326 = vmatprep.subr.bf16.mxu0 0
      %327 = vmatpush1.bf16.msra.mxu0 %v296
      %328 = vmatprep.subr.bf16.mxu0 0
      %329 = vmatpush2.bf16.msra.mxu0 0
      %330 = vmatprep.subr.bf16.mxu0 0
      %331 = vmatpush2.bf16.msra.mxu0 0
      %332 = vmatprep.subr.bf16.mxu0 0
      %333 = vmatpush2.bf16.msra.mxu0 0
      %334 = vmatprep.subr.bf16.mxu0 0
      %335 = vmatpush2.bf16.msra.mxu0 0
      %336 = vmatprep.subr.bf16.mxu0 0
      %337 = vmatpush2.bf16.msra.mxu0 0
      %338 = vmatprep.subr.bf16.mxu0 0
      %339 = vmatpush2.bf16.msra.mxu0 0
      %340 = vmatprep.subr.bf16.mxu0 0
      %341 = vmatpush2.bf16.msra.mxu0 0
      %342 = vmatprep.subr.bf16.mxu0 0
      %343 = vmatpush2.bf16.msra.mxu0 0
      %344 = vmatprep.mubr.bf16.mxu0 0
      %345 = vmatmul.mubr.bf16.gmra.mxu0 %v262
      %v346 = vpop.f32.mrf.mxu0
      %v347 = vadd.f32 %v256, %v346
      %v348 = vpop.f32.mrf.mxu0
      %v349 = vpop.f32.mrf.mxu0
      %v350 = vadd.f32 %v256, %v349
      %v351 = vpop.f32.mrf.mxu0
      %352 = vdwg.mxu0
      %v353 = vmax.f32 %v347, 0.0
      %v354 = vmax.f32 %v350, 0.0
      %v355 = vpack.c.bf16 %v354, %v353
      %v357 = vunpack.c.l.b16 %v355
      %v358 = vunpack.c.h.b16 %v355
      %v359 = vpack.c.b16 %v357, %v357
      %v360 = vpack.c.b16 %v358, %v358
      %363 = vst [vmem:[%s224] sm:$0xf] %v359
      %364 = vst [vmem:[%s224 + $0x4] sm:$0xf] %v360
      %v365 = vld [vmem:[#allocation2] sm:$0x1]
      %v366 = vadd.f32 %v353, %v354
      %v367 = vrot.slane %v366, 4
      %v368 = vadd.f32 %v366, %v367
      %v369 = vrot.slane %v368, 2
      %v370 = vadd.f32 %v368, %v369
      %v371 = vrot.slane %v370, 1
      %v372 = vadd.f32 %v370, %v371
      %v373 = vadd.f32 %v365, %v372
      %374 = vst [vmem:[#allocation2] sm:$0x1] %v373
      %v375 = vld [vmem:[#allocation3] sm:$0x1]
      %v376 = vmul.f32 %v353, %v353
      %v377 = vmul.f32 %v354, %v354
      %v378 = vadd.f32 %v376, %v377
      %v379 = vrot.slane %v378, 4
      %v380 = vadd.f32 %v378, %v379
      %v381 = vrot.slane %v380, 2
      %v382 = vadd.f32 %v380, %v381
      %v383 = vrot.slane %v382, 1
      %v384 = vadd.f32 %v382, %v383
      %v385 = vadd.f32 %v375, %v384
      %386 = vst [vmem:[#allocation3] sm:$0x1] %v385
      %p387 = scmp.eq.s32.totalorder %s17, 1
      // Predicated region
      $region41: #{ddc_forward.2} parent=35 // pred_check
        %p388 = pneg %p387
      $region42: #{ddc_forward.2} parent=35 // pred_check_branch
        %390 = sbr.rel (%p388) target = $region44
      $region43: #{ddc_forward.2} parent=35 // pred_region
        %v391 = vld [vmem:[#allocation2] sm:$0x1]
        %v392 = vld [vmem:[#allocation3] sm:$0x1]
        %v393 = vld [vmem:[%s2] sm:$0x1]
        %v394 = vmax.f32 %v393, 0.0
        %v395 = vmul.f32 %v394, 4.0
        %v396 = vsub.f32 %v391, %v395
        %v397 = vmul.f32 %v394, %v394
        %v398 = vmul.f32 %v397, 4.0
        %v399 = vsub.f32 %v392, %v398
        %v400 = vmul.f32 %v396, 0.035714287
        %v401 = vmul.f32 %v399, 0.035714287
        %v402 = vmul.f32 %v400, %v400
        %v403 = vsub.f32 %v401, %v402
        %v404 = vmax.f32 %v403, 0.0
        %v405 = vld [vmem:[%s3] sm:$0x1]
        %v406 = vadd.f32 %v404, 1e-05
        %v407 = vrsqrt.pop %v406
        %v408 = vmul.f32 %v405, %v407
        %v409 = vld [vmem:[%s3 + $0x1] sm:$0x1]
        %v410 = vmul.f32 %v400, %v408
        %v411 = vsub.f32 %v409, %v410
        %412 = vst [vmem:[%s5] sm:$0x1] %v408
        %413 = vst [vmem:[%s5 + $0x1] sm:$0x1] %v411
      $region44: #{ddc_forward.2} parent=35 // pred_fallthru
        _
      %s414 = smul.u32 2, %s17
      %p415 = scmp.lt.s32.totalorder %s414, 3
      %s416 = scalar_select %p415, %s414, 3
      %s417 = smul.addr %s416, 4
      %s418 = scalar_lea.vmem %s4, %s417
      // Predicated region
      $region45: #{ddc_forward.2} parent=35 // pred_check
        %p419 = pneg %p124
      $region46: #{ddc_forward.2} parent=35 // pred_check_branch
        %421 = sbr.rel (%p419) target = $region48
      $region47: #{ddc_forward.2} parent=35 // pred_region
        %s422 = smul.u32 2, %s17
      $region48: #{ddc_forward.2} parent=35 // pred_fallthru
        _
      // Predicated region
      $region49: #{ddc_forward.2} parent=35 // pred_check
        %p423 = pneg %p145
      $region50: #{ddc_forward.2} parent=35 // pred_check_branch
        %425 = sbr.rel (%p423) target = $region52
      $region51: #{ddc_forward.2} parent=35 // pred_region
        _
      $region52: #{ddc_forward.2} parent=35 // pred_fallthru
        _
      // Predicated region
      $region53: #{ddc_forward.2} parent=35 // pred_check
        %p426 = pneg %p145
      $region54: #{ddc_forward.2} parent=35 // pred_check_branch
        %428 = sbr.rel (%p426) target = $region56
      $region55: #{ddc_forward.2} parent=35 // pred_region
        _
      $region56: #{ddc_forward.2} parent=35 // pred_fallthru
        _
    $region36: #{ddc_forward.2} parent=5 // pred_fallthru
      _
    %p429 = scmp.le.s32.totalorder 2, %s12
    // Predicated region
    $region57: #{ddc_forward.2} parent=5 // pred_check
      %p430 = pneg %p429
    $region58: #{ddc_forward.2} parent=5 // pred_check_branch
      %432 = sbr.rel (%p430) target = $region60
    $region59: #{ddc_forward.2} parent=5 // pred_region
      %s433 = ssub.s32 %s12, 2
      // Predicated region
      $region61: #{ddc_forward.2} parent=59 // pred_check
        %p434 = pneg %p130
      $region62: #{ddc_forward.2} parent=59 // pred_check_branch
        %436 = sbr.rel (%p434) target = $region64
      $region63: #{ddc_forward.2} parent=59 // pred_region
        %s437 = smul.u32 2, %s18
        %p438 = scmp.lt.s32.totalorder %s437, 3
        %s439 = scalar_select %p438, %s437, 3
        %s440 = smul.addr %s439, 4
        %s441 = scalar_lea.vmem %s4, %s440
      $region64: #{ddc_forward.2} parent=59 // pred_fallthru
        _
    $region60: #{ddc_forward.2} parent=5 // pred_fallthru
      _
  $region6: #{ddc_forward.2} parent=0 // loop_footer
    %s16 = sadd.s32 1, %s12
  $region7: #{ddc_forward.2} parent=0 // loop_footer_branch
    %11 = sbr.rel target = $region3
  $region8: #{ddc_forward.2} parent=0 // loop_exit
    _

// kernel: ddc_forward.3
$region0: #{ddc_forward.3}
  #allocation0 [shape = 'u32[]', space=smem, size = 0x4, offset = 0x4, fixed_abs, tag = 'smem constant byte address 0x4 - core index']
  #allocation1 [shape = 'u32[144,128]{1,0:T(1,128)}', space=vmem, size = 0x12000, scoped, tag = 'internal scratch']
  %s0 = inlined_call_operand.vmem [shape: f32[2,128], index: 0, kind: input, shape index: {}]
  %s1 = inlined_call_operand.vmem [shape: bf16[32,128], index: 1, kind: input, shape index: {}]
  %s2 = inlined_call_operand.vmem [shape: bf16[128,128], index: 2, kind: input, shape index: {}]
  %s3 = inlined_call_operand.vmem [shape: f32[1,128], index: 3, kind: input, shape index: {}]
  %s4 = inlined_call_operand.hbm [shape: f32[32,128], index: 4, kind: output, shape index: {0}]
  %s5 = inlined_call_operand.vmem [shape: f32[32,128], index: 5, kind: output, shape index: {1}]
  %6 = xla_tuple %s4, %s5
  %s7 = sld [smem:[#allocation0]]
  $region57: #{ddc_forward.3} parent=0
    _
  %s9 = ssub.s32 1, %s7
  %s10 = scalar_select 0, %s9, %s7
  $region1: #{ddc_forward.3} parent=0
    #allocation2 [shape = 'u8[16384]{0}', space=vmem, size = 0x4000, scoped, tag = 'output window, operand 0']
    #allocation3 [shape = 's32[2]{0}', space=sflag, size = 0x8, scoped, tag = 'scoped memory for ddc_forward.3']
    %11 = vsyncpa [#allocation3], 0
    %s12 = scalar_lea.sflag [#allocation3], 1
    %13 = vsyncpa %s12, 0
    loop: start=0, step=1, limit=4
    $region2: #{ddc_forward.3} parent=1 // loop_pre_header
      _
    $region3: #{ddc_forward.3} parent=1 // loop_header
      %s15 = sphi 0, %s19
      %p16 = scmp.ge.s32.totalorder %s15, 4
      %s23 = sphi 0, %s23
      %s25 = sphi 0, %s23
      %s26 = sphi 0, %s25
      %s40 = sphi 0, %s26
      %s46 = sphi 0, %s48
      %s49 = sphi 0, %s46
      %s50 = sphi 0, %s49
      %s66 = sphi 0, %s50
      %s70 = sphi 0, %s70
      %s72 = sphi 0, %s70
      %s73 = sphi 0, %s72
      %s87 = sphi 0, %s73
      %s91 = sphi 0, %s91
      %s93 = sphi 0, %s91
      %s94 = sphi 0, %s93
      %s108 = sphi 0, %s94
      %s114 = sphi 0, %s116
      %s117 = sphi 0, %s114
      %s118 = sphi 0, %s117
      %s134 = sphi 0, %s118
      %s140 = sphi 0, %s142
      %s143 = sphi 0, %s140
      %s144 = sphi 0, %s143
      %s160 = sphi 0, %s144
    $region4: #{ddc_forward.3} parent=1 // loop_header_branch
      %18 = sbr.rel (%p16) target = $region8
    $region5: #{ddc_forward.3} parent=1 // loop_body
      %s20 = ssub.s32 %s15, 1
      %s21 = ssub.s32 %s15, 2
      %s22 = sadd.s32 %s15, 1
      %s24 = sadd.s32 %s23, 1
      %p27 = scmp.eq.s32.totalorder %s15, 1
      %p28 = scmp.ne.s32.totalorder %s23, %s25
      %p29 = scmp.eq.s32.totalorder %s15, 0
      %p30 = por %p28, %p29
      %p31 = scmp.ne.s32.totalorder %s23, %s25
      %p32 = scmp.eq.s32.totalorder %s20, 1
      %p33 = por %p31, %p32
      %p34 = scmp.ne.s32.totalorder %s25, %s26
      %p35 = scmp.eq.s32.totalorder %s20, 0
      %p36 = por %p34, %p35
      %p37 = scmp.ne.s32.totalorder %s25, %s26
      %p38 = scmp.eq.s32.totalorder %s21, 1
      %p39 = por %p37, %p38
      %p41 = scmp.ne.s32.totalorder %s26, %s40
      %p42 = scmp.eq.s32.totalorder %s21, 0
      %p43 = por %p41, %p42
      %s44 = ssub.s32 %s15, %s22
      %p45 = scmp.eq.s32.totalorder %s44, 0
      %s47 = sadd.s32 %s46, 1
      %s48 = scalar_select %p45, %s46, %s47
      %p51 = pneg %p45
      %p52 = scmp.eq.s32.totalorder %s15, 1
      %p53 = por %p51, %p52
      %p54 = scmp.ne.s32.totalorder %s46, %s49
      %p55 = scmp.eq.s32.totalorder %s15, 0
      %p56 = por %p54, %p55
      %p57 = scmp.ne.s32.totalorder %s46, %s49
      %p58 = scmp.eq.s32.totalorder %s20, 1
      %p59 = por %p57, %p58
      %p60 = scmp.ne.s32.totalorder %s49, %s50
      %p61 = scmp.eq.s32.totalorder %s20, 0
      %p62 = por %p60, %p61
      %p63 = scmp.ne.s32.totalorder %s49, %s50
      %p64 = scmp.eq.s32.totalorder %s21, 1
      %p65 = por %p63, %p64
      %p67 = scmp.ne.s32.totalorder %s50, %s66
      %p68 = scmp.eq.s32.totalorder %s21, 0
      %p69 = por %p67, %p68
      %s71 = sadd.s32 %s70, 1
      %p74 = scmp.eq.s32.totalorder %s15, 1
      %p75 = scmp.ne.s32.totalorder %s70, %s72
      %p76 = scmp.eq.s32.totalorder %s15, 0
      %p77 = por %p75, %p76
      %p78 = scmp.ne.s32.totalorder %s70, %s72
      %p79 = scmp.eq.s32.totalorder %s20, 1
      %p80 = por %p78, %p79
      %p81 = scmp.ne.s32.totalorder %s72, %s73
      %p82 = scmp.eq.s32.totalorder %s20, 0
      %p83 = por %p81, %p82
      %p84 = scmp.ne.s32.totalorder %s72, %s73
      %p85 = scmp.eq.s32.totalorder %s21, 1
      %p86 = por %p84, %p85
      %p88 = scmp.ne.s32.totalorder %s73, %s87
      %p89 = scmp.eq.s32.totalorder %s21, 0
      %p90 = por %p88, %p89
      %s92 = sadd.s32 %s91, 1
      %p95 = scmp.eq.s32.totalorder %s15, 1
      %p96 = scmp.ne.s32.totalorder %s91, %s93
      %p97 = scmp.eq.s32.totalorder %s15, 0
      %p98 = por %p96, %p97
      %p99 = scmp.ne.s32.totalorder %s91, %s93
      %p100 = scmp.eq.s32.totalorder %s20, 1
      %p101 = por %p99, %p100
      %p102 = scmp.ne.s32.totalorder %s93, %s94
      %p103 = scmp.eq.s32.totalorder %s20, 0
      %p104 = por %p102, %p103
      %p105 = scmp.ne.s32.totalorder %s93, %s94
      %p106 = scmp.eq.s32.totalorder %s21, 1
      %p107 = por %p105, %p106
      %p109 = scmp.ne.s32.totalorder %s94, %s108
      %p110 = scmp.eq.s32.totalorder %s21, 0
      %p111 = por %p109, %p110
      %s112 = ssub.s32 %s15, %s22
      %p113 = scmp.eq.s32.totalorder %s112, 0
      %s115 = sadd.s32 %s114, 1
      %s116 = scalar_select %p113, %s114, %s115
      %p119 = pneg %p113
      %p120 = scmp.eq.s32.totalorder %s15, 1
      %p121 = por %p119, %p120
      %p122 = scmp.ne.s32.totalorder %s114, %s117
      %p123 = scmp.eq.s32.totalorder %s15, 0
      %p124 = por %p122, %p123
      %p125 = scmp.ne.s32.totalorder %s114, %s117
      %p126 = scmp.eq.s32.totalorder %s20, 1
      %p127 = por %p125, %p126
      %p128 = scmp.ne.s32.totalorder %s117, %s118
      %p129 = scmp.eq.s32.totalorder %s20, 0
      %p130 = por %p128, %p129
      %p131 = scmp.ne.s32.totalorder %s117, %s118
      %p132 = scmp.eq.s32.totalorder %s21, 1
      %p133 = por %p131, %p132
      %p135 = scmp.ne.s32.totalorder %s118, %s134
      %p136 = scmp.eq.s32.totalorder %s21, 0
      %p137 = por %p135, %p136
      %s138 = ssub.s32 %s15, %s22
      %p139 = scmp.eq.s32.totalorder %s138, 0
      %s141 = sadd.s32 %s140, 1
      %s142 = scalar_select %p139, %s140, %s141
      %p145 = pneg %p139
      %p146 = scmp.eq.s32.totalorder %s15, 1
      %p147 = por %p145, %p146
      %p148 = scmp.ne.s32.totalorder %s140, %s143
      %p149 = scmp.eq.s32.totalorder %s15, 0
      %p150 = por %p148, %p149
      %p151 = scmp.ne.s32.totalorder %s140, %s143
      %p152 = scmp.eq.s32.totalorder %s20, 1
      %p153 = por %p151, %p152
      %p154 = scmp.ne.s32.totalorder %s143, %s144
      %p155 = scmp.eq.s32.totalorder %s20, 0
      %p156 = por %p154, %p155
      %p157 = scmp.ne.s32.totalorder %s143, %s144
      %p158 = scmp.eq.s32.totalorder %s21, 1
      %p159 = por %p157, %p158
      %p161 = scmp.ne.s32.totalorder %s144, %s160
      %p162 = scmp.eq.s32.totalorder %s21, 0
      %p163 = por %p161, %p162
      %p164 = scmp.le.s32.totalorder 1, %s15
      %p165 = scmp.lt.s32.totalorder %s15, 3
      %p166 = pnand %p164, %p165
      %p167 = pneg %p166
      // Predicated region
      $region9: #{ddc_forward.3} parent=5 // pred_check
        _
      $region10: #{ddc_forward.3} parent=5 // pred_check_branch
        %169 = sbr.rel (%p166) target = $region12
      $region11: #{ddc_forward.3} parent=5 // pred_region
        %s170 = ssub.s32 %s15, 1
        // Predicated region
        $region13: #{ddc_forward.3} parent=11 // pred_check
          %p171 = pneg %p36
        $region14: #{ddc_forward.3} parent=11 // pred_check_branch
          %173 = sbr.rel (%p171) target = $region16
        $region15: #{ddc_forward.3} parent=11 // pred_region
          _
        $region16: #{ddc_forward.3} parent=11 // pred_fallthru
          _
        // Predicated region
        $region17: #{ddc_forward.3} parent=11 // pred_check
          %p174 = pneg %p83
        $region18: #{ddc_forward.3} parent=11 // pred_check_branch
          %176 = sbr.rel (%p174) target = $region20
        $region19: #{ddc_forward.3} parent=11 // pred_region
          _
        $region20: #{ddc_forward.3} parent=11 // pred_fallthru
          _
        // Predicated region
        $region21: #{ddc_forward.3} parent=11 // pred_check
          %p177 = pneg %p104
        $region22: #{ddc_forward.3} parent=11 // pred_check_branch
          %179 = sbr.rel (%p177) target = $region24
        $region23: #{ddc_forward.3} parent=11 // pred_region
          _
        $region24: #{ddc_forward.3} parent=11 // pred_fallthru
          _
      $region12: #{ddc_forward.3} parent=5 // pred_fallthru
        _
      %p180 = scmp.lt.s32.totalorder %s15, 2
      // Predicated region
      $region25: #{ddc_forward.3} parent=5 // pred_check
        %p181 = pneg %p180
      $region26: #{ddc_forward.3} parent=5 // pred_check_branch
        %183 = sbr.rel (%p181) target = $region28
      $region27: #{ddc_forward.3} parent=5 // pred_region
        // Predicated region
        $region29: #{ddc_forward.3} parent=27 // pred_check
          %p184 = pneg %p56
        $region30: #{ddc_forward.3} parent=27 // pred_check_branch
          %186 = sbr.rel (%p184) target = $region32
        $region31: #{ddc_forward.3} parent=27 // pred_region
          %s187 = smul.u32 2, %s15
          %p188 = scmp.lt.s32.totalorder %s187, 3
          %s189 = scalar_select %p188, %s187, 3
          %s190 = smul.addr %s189, 4
          %s191 = scalar_lea.vmem %s1, %s190
          %s192 = smul.u32 2, %s15
        $region32: #{ddc_forward.3} parent=27 // pred_fallthru
          _
      $region28: #{ddc_forward.3} parent=5 // pred_fallthru
        _
      %p193 = scmp.le.s32.totalorder 1, %s15
      %p194 = scmp.lt.s32.totalorder %s15, 3
      %p195 = pnand %p193, %p194
      %p196 = pneg %p195
      // Predicated region
      $region33: #{ddc_forward.3} parent=5 // pred_check
        _
      $region34: #{ddc_forward.3} parent=5 // pred_check_branch
        %198 = sbr.rel (%p195) target = $region36
      $region35: #{ddc_forward.3} parent=5 // pred_region
        %s199 = ssub.s32 %s15, 1
        %p200 = pneg %p36
        %p201 = pneg %p33
        %s202 = smul.u32 2, %s20
        %p203 = scmp.lt.s32.totalorder %s202, 3
        %s204 = scalar_select %p203, %s202, 3
        %s205 = smul.addr %s204, 4
        %s206 = scalar_lea.vmem %s1, %s205
        %p207 = pneg %p62
        %p208 = pneg %p59
        %p209 = pneg %p83
        %p210 = pneg %p80
        %p211 = pneg %p104
        %p212 = pneg %p101
        %p213 = pneg %p130
        %p214 = pneg %p127
        %s215 = sand.u32 %s117, 1
        %s216 = scalar_lea.sflag [#allocation3], %s215
        %s217 = sand.u32 %s117, 1
        %s218 = smul.addr %s217, 16
        %s219 = scalar_lea.vmem [#allocation2], %s218
        %p220 = pneg %p156
        %p221 = pneg %p153
        %s222 = smul.u32 2, %s20
        %p223 = scmp.lt.s32.totalorder %s222, 3
        %s224 = scalar_select %p223, %s222, 3
        %s225 = smul.addr %s224, 8
        %s226 = scalar_lea.vmem %s5, %s225
        %s227 = smul.u32 2, %s20
        %p228 = scmp.lt.s32.totalorder %s227, 3
        %s229 = scalar_select %p228, %s227, 3
        %s230 = smul.addr %s229, 4
        %s231 = scalar_lea.vmem %s1, %s230
        %s232 = smul.u32 2, %s20
        %s233 = smul.u32 2, %s20
        %s234 = smul.u32 2, %s20
        %p235 = scmp.lt.s32.totalorder %s234, 3
        %s236 = scalar_select %p235, %s234, 3
        %s237 = smul.addr %s236, 8
        %s238 = scalar_lea.vmem %s5, %s237
        %s239 = smul.u32 2, %s20
        %v241 = vld [vmem:[%s0] sm:$0x1]
        %v242 = vld [vmem:[%s0 + $0x1] sm:$0x1]
        %v243 = vld [vmem:[%s231] sm:$0xf]
        %v244 = vld [vmem:[%s231 + $0x4] sm:$0xf]
        %v245 = vunpack.c.l.bf16 %v243
        %v246 = vunpack.c.l.bf16 %v244
        %v247 = vlaneseq
        %v248 = vshrl.u32 %v247, 7
        %v249 = vsub.s32 0, %v248
        %v250 = vrot.slane %v241, %v249
        %v251 = vmul.f32 %v245, %v250
        %v252 = vmul.f32 %v246, %v250
        %v253 = vlaneseq
        %v254 = vshrl.u32 %v253, 7
        %v255 = vsub.s32 0, %v254
        %v256 = vrot.slane %v242, %v255
        %v257 = vadd.f32 %v251, %v256
        %v258 = vadd.f32 %v252, %v256
        %259 = vst [vmem:[%s219] sm:$0xff] %v257
        %260 = vst [vmem:[%s219 + $0x8] sm:$0xff] %v258
        %v261 = vpack.c.bf16 %v258, %v257
        %v262 = vld [vmem:[%s2] sm:$0xf]
        %v263 = vld [vmem:[%s2 + $0x4] sm:$0xf]
        %v264 = vld [vmem:[%s2 + $0x8] sm:$0xf]
        %v265 = vld [vmem:[%s2 + $0xc] sm:$0xf]
        %v266 = vld [vmem:[%s2 + $0x10] sm:$0xf]
        %v267 = vld [vmem:[%s2 + $0x14] sm:$0xf]
        %v268 = vld [vmem:[%s2 + $0x18] sm:$0xf]
        %v269 = vld [vmem:[%s2 + $0x1c] sm:$0xf]
        %v270 = vld [vmem:[%s2 + $0x20] sm:$0xf]
        %v271 = vld [vmem:[%s2 + $0x24] sm:$0xf]
        %v272 = vld [vmem:[%s2 + $0x28] sm:$0xf]
        %v273 = vld [vmem:[%s2 + $0x2c] sm:$0xf]
        %v274 = vld [vmem:[%s2 + $0x30] sm:$0xf]
        %v275 = vld [vmem:[%s2 + $0x34] sm:$0xf]
        %v276 = vld [vmem:[%s2 + $0x38] sm:$0xf]
        %v277 = vld [vmem:[%s2 + $0x3c] sm:$0xf]
        %v278 = vld [vmem:[%s3] sm:$0x1]
        %v280 = vlaneseq
        %v281 = vshrl.u32 %v280, 7
        %v282 = vsub.s32 0, %v281
        %v283 = vrot.slane %v278, %v282
        %v301 = vunpack.c.l.b16 %v262
        %v302 = vunpack.c.l.b16 %v263
        %v303 = vunpack.c.l.b16 %v264
        %v304 = vunpack.c.l.b16 %v265
        %v305 = vunpack.c.l.b16 %v266
        %v306 = vunpack.c.l.b16 %v267
        %v307 = vunpack.c.l.b16 %v268
        %v308 = vunpack.c.l.b16 %v269
        %v309 = vunpack.c.l.b16 %v270
        %v310 = vunpack.c.l.b16 %v271
        %v311 = vunpack.c.l.b16 %v272
        %v312 = vunpack.c.l.b16 %v273
        %v313 = vunpack.c.l.b16 %v274
        %v314 = vunpack.c.l.b16 %v275
        %v315 = vunpack.c.l.b16 %v276
        %v316 = vunpack.c.l.b16 %v277
        %v317 = vpack.c.b16 %v302, %v301
        %v318 = vpack.c.b16 %v304, %v303
        %v319 = vpack.c.b16 %v306, %v305
        %v320 = vpack.c.b16 %v308, %v307
        %v321 = vpack.c.b16 %v310, %v309
        %v322 = vpack.c.b16 %v312, %v311
        %v323 = vpack.c.b16 %v314, %v313
        %v324 = vpack.c.b16 %v316, %v315
        %333 = vmatprep.subr.bf16.mxu0 0
        %334 = vmatpush1.bf16.msra.mxu0 %v324
        %335 = vmatprep.subr.bf16.mxu0 0
        %336 = vmatpush1.bf16.msra.mxu0 %v323
        %337 = vmatprep.subr.bf16.mxu0 0
        %338 = vmatpush1.bf16.msra.mxu0 %v322
        %339 = vmatprep.subr.bf16.mxu0 0
        %340 = vmatpush1.bf16.msra.mxu0 %v321
        %341 = vmatprep.subr.bf16.mxu0 0
        %342 = vmatpush1.bf16.msra.mxu0 %v320
        %343 = vmatprep.subr.bf16.mxu0 0
        %344 = vmatpush1.bf16.msra.mxu0 %v319
        %345 = vmatprep.subr.bf16.mxu0 0
        %346 = vmatpush1.bf16.msra.mxu0 %v318
        %347 = vmatprep.subr.bf16.mxu0 0
        %348 = vmatpush1.bf16.msra.mxu0 %v317
        %349 = vmatprep.subr.bf16.mxu0 0
        %350 = vmatpush2.bf16.msra.mxu0 0
        %351 = vmatprep.subr.bf16.mxu0 0
        %352 = vmatpush2.bf16.msra.mxu0 0
        %353 = vmatprep.subr.bf16.mxu0 0
        %354 = vmatpush2.bf16.msra.mxu0 0
        %355 = vmatprep.subr.bf16.mxu0 0
        %356 = vmatpush2.bf16.msra.mxu0 0
        %357 = vmatprep.subr.bf16.mxu0 0
        %358 = vmatpush2.bf16.msra.mxu0 0
        %359 = vmatprep.subr.bf16.mxu0 0
        %360 = vmatpush2.bf16.msra.mxu0 0
        %361 = vmatprep.subr.bf16.mxu0 0
        %362 = vmatpush2.bf16.msra.mxu0 0
        %363 = vmatprep.subr.bf16.mxu0 0
        %364 = vmatpush2.bf16.msra.mxu0 0
        %365 = vmatprep.mubr.bf16.mxu0 0
        %366 = vmatmul.mubr.bf16.gmra.mxu0 %v261
        %v367 = vpop.f32.mrf.mxu0
        %v368 = vadd.f32 %v283, %v367
        %v369 = vpop.f32.mrf.mxu0
        %v370 = vpop.f32.mrf.mxu0
        %v371 = vadd.f32 %v283, %v370
        %v372 = vpop.f32.mrf.mxu0
        %373 = vdwg.mxu0
        %374 = vmax.xlane.f32.xlu0 %v368
        %v375 = vpop.xlane.xlu0 %374
        %376 = vmax.xlane.f32.xlu0 %v371
        %v377 = vpop.xlane.xlu0 %376
        %v378 = vsub.f32 %v368, %v375
        %v379 = vsub.f32 %v371, %v377
        %v380 = vmul.f32 %v378, 1.442695
        %v381 = vpow.pop %v380
        %v382 = vmul.f32 %v379, 1.442695
        %v383 = vpow.pop %v382
        %384 = vadd.xlane.f32.xlu0 %v381
        %v385 = vpop.xlane.xlu0 %384
        %386 = vadd.xlane.f32.xlu0 %v383
        %v387 = vpop.xlane.xlu0 %386
        %v388 = vrcp.pop %v385
        %v389 = vrcp.pop %v387
        %v390 = vmul.f32 %v385, %v388
        %v391 = vmul.f32 %v387, %v389
        %v392 = vsub.f32 2.0, %v390
        %v393 = vsub.f32 2.0, %v391
        %v394 = vmul.f32 %v388, %v392
        %v395 = vmul.f32 %v389, %v393
        %v396 = vmul.f32 %v381, %v394
        %v397 = vmul.f32 %v383, %v395
        %398 = vst [vmem:[%s238] sm:$0xff] %v396
        %399 = vst [vmem:[%s238 + $0x8] sm:$0xff] %v397
        %s400 = sand.u32 %s117, 1
        %s401 = scalar_lea.sflag [#allocation3], %s400
        %s402 = sand.u32 %s117, 1
        %s403 = smul.addr %s402, 16
        %s404 = scalar_lea.vmem [#allocation2], %s403
        %s405 = smul.u32 2, %s20
        %p406 = scmp.lt.s32.totalorder %s405, 3
        %s407 = scalar_select %p406, %s405, 3
        %s408 = smul.addr %s407, 8
        %s409 = scalar_lea.vmem %s5, %s408
        // Predicated region
        $region37: #{ddc_forward.3} parent=35 // pred_check
          %p410 = pneg %p127
        $region38: #{ddc_forward.3} parent=35 // pred_check_branch
          %412 = sbr.rel (%p410) target = $region40
        $region39: #{ddc_forward.3} parent=35 // pred_region
          %s413 = smul.u32 2, %s20
          %s415 = ssub.s32 256, 256
          %416 = vsyncadd %s401, %s415
          %s417 = smul.addr %s413, 128
          %s418 = scalar_lea.hbm %s4, %s417
          %s419 = sshll.u32 %s404, 4
          %s420 = int_to_ptr.vmem [resolvable:$true] %s419
          %425 = dma.vmem_to_hbm [thread:$0]  %s420, 256, %s418, %s401, 128, 128, 8
        $region40: #{ddc_forward.3} parent=35 // pred_fallthru
          _
        // Predicated region
        $region41: #{ddc_forward.3} parent=35 // pred_check
          %p426 = pneg %p153
        $region42: #{ddc_forward.3} parent=35 // pred_check_branch
          %428 = sbr.rel (%p426) target = $region44
        $region43: #{ddc_forward.3} parent=35 // pred_region
          %s429 = smul.u32 2, %s20
        $region44: #{ddc_forward.3} parent=35 // pred_fallthru
          _
      $region36: #{ddc_forward.3} parent=5 // pred_fallthru
        _
      %p430 = scmp.le.s32.totalorder 2, %s15
      // Predicated region
      $region45: #{ddc_forward.3} parent=5 // pred_check
        %p431 = pneg %p430
      $region46: #{ddc_forward.3} parent=5 // pred_check_branch
        %433 = sbr.rel (%p431) target = $region48
      $region47: #{ddc_forward.3} parent=5 // pred_region
        %s434 = ssub.s32 %s15, 2
        // Predicated region
        $region49: #{ddc_forward.3} parent=47 // pred_check
          %p435 = pneg %p133
        $region50: #{ddc_forward.3} parent=47 // pred_check_branch
          %437 = sbr.rel (%p435) target = $region52
        $region51: #{ddc_forward.3} parent=47 // pred_region
          %s438 = sand.u32 %s118, 1
          %s439 = scalar_lea.sflag [#allocation3], %s438
          %s440 = sand.u32 %s118, 1
          %s441 = smul.addr %s440, 16
          %s442 = scalar_lea.vmem [#allocation2], %s441
          %443 = dma.done %s439, 256
        $region52: #{ddc_forward.3} parent=47 // pred_fallthru
          _
        // Predicated region
        $region53: #{ddc_forward.3} parent=47 // pred_check
          %p444 = pneg %p159
        $region54: #{ddc_forward.3} parent=47 // pred_check_branch
          %446 = sbr.rel (%p444) target = $region56
        $region55: #{ddc_forward.3} parent=47 // pred_region
          %s447 = smul.u32 2, %s21
          %p448 = scmp.lt.s32.totalorder %s447, 3
          %s449 = scalar_select %p448, %s447, 3
          %s450 = smul.addr %s449, 8
          %s451 = scalar_lea.vmem %s5, %s450
        $region56: #{ddc_forward.3} parent=47 // pred_fallthru
          _
      $region48: #{ddc_forward.3} parent=5 // pred_fallthru
        _
    $region6: #{ddc_forward.3} parent=1 // loop_footer
      %s19 = sadd.s32 1, %s15
    $region7: #{ddc_forward.3} parent=1 // loop_footer_branch
      %14 = sbr.rel target = $region3
    $region8: #{ddc_forward.3} parent=1 // loop_exit
      _
    %452 = vsyncpa [#allocation3], 1
    %s453 = scalar_lea.sflag [#allocation3], 1
    %454 = vsyncpa %s453, 1

</llo_original>
